<compile_context>
chip_gen: v7x
topology: tpu7x:2x2x1
jax: 0.10.0
libtpu: 0.0.40
codegen_flags: <defaults>
</compile_context>

<pallas_src>
import functools

import jax
import jax.numpy as jnp
from jax.experimental import pallas as pl
from jax.experimental.pallas import tpu as pltpu


def _round_up(x: int, m: int) -> int:
    return ((x + m - 1) // m) * m


def _align_down(x: int, m: int) -> int:
    return (x // m) * m


def _halving_candidates(start: int, align: int, floor: int):
    """start, start/2, ... each rounded up to `align`, descending, stopping at `floor`."""
    cands = []
    v = max(floor, _round_up(start, align))
    while True:
        if not cands or v != cands[-1]:
            cands.append(v)
        if v <= floor:
            break
        v = max(floor, _round_up(v // 2, align))
    return cands


def _vmem_capacity_bytes() -> int:
    try:
        info = pltpu.get_tpu_info()
        cap = int(getattr(info, "vmem_capacity_bytes", 0))
        if cap > 0:
            return cap
    except Exception:
        pass
    return 64 * 1024 * 1024  # conservative default: v7x per-TensorCore VMEM


def _tile_bytes(tm, tn, tk, in_isz, out_isz, k_tiled):
    # Double-buffered pipelined operands + output tiles (+ f32 accumulator if K-tiled).
    b = 2 * (tm * tk + tk * tn) * in_isz + 2 * tn * 4 + 2 * tm * tn * out_isz
    if k_tiled:
        b += tm * tn * 4
    return b


def _choose_nk(Np, Kp, tn_start, in_isz, out_isz, budget, tm_nominal):
    """Pick (tn, tk, k_tiled). Prefer a single full-depth MXU pass (no K tiling)."""
    for cand_tn in _halving_candidates(tn_start, 128, 128):
        if _tile_bytes(tm_nominal, cand_tn, Kp, in_isz, out_isz, False) <= budget:
            return cand_tn, Kp, False
    for cand_tn in _halving_candidates(tn_start, 128, 128):
        for cand_tk in _halving_candidates(min(Kp, 2048), 128, 128):
            if _tile_bytes(tm_nominal, cand_tn, cand_tk, in_isz, out_isz, True) <= budget:
                return cand_tn, cand_tk, True
    return 128, 128, True  # last resort


# ----------------------------- kernels --------------------------------------


def _linear_kernel(x_ref, w_ref, b_ref, o_ref):
    # Full-depth reduction in one MXU pass; bias added in f32, single cast on store.
    o_ref[...] = (
        jnp.dot(x_ref[...], w_ref[...], preferred_element_type=jnp.float32)
        + b_ref[...]
    ).astype(o_ref.dtype)


def _linear_kernel_ktiled(x_ref, w_ref, b_ref, o_ref, acc_ref):
    # Fallback for very large D_in: K-innermost grid with f32 VMEM accumulator.
    k = pl.program_id(2)

    @pl.when(k == 0)
    def _():
        acc_ref[...] = jnp.zeros_like(acc_ref)

    acc_ref[...] += jnp.dot(
        x_ref[...], w_ref[...], preferred_element_type=jnp.float32
    )

    @pl.when(k == pl.num_programs(2) - 1)
    def _():
        o_ref[...] = (acc_ref[...] + b_ref[...]).astype(o_ref.dtype)


# ----------------------------- wrapper ---------------------------------------


def make_linear_classifier(w, b, *, compute_dtype=None, out_dtype=None,
                           vmem_fraction=0.5):
    """Pre-pads/casts the parameters once and returns a jitted apply(x) -> y.

    Implements y = x @ w + b (PyTorch nn.Linear with weight = w.T, bias = b).
    """
    D_in, D_out = w.shape
    assert b.shape == (D_out,)

    in_dtype = jnp.dtype(compute_dtype) if compute_dtype is not None else jnp.dtype(w.dtype)
    in_isz = in_dtype.itemsize
    out_isz_budget = 4  # budget conservatively for f32 output tiles

    Kp = _round_up(D_in, 128)
    Np = _round_up(D_out, 128)

    capacity = _vmem_capacity_bytes()
    budget = max(int(capacity * vmem_fraction), 8 * 1024 * 1024)

    # Nominal M tile used only to size (tn, tk): up to 1024 rows.
    tm_nominal = 1024

    # Keep the N grid axis >= 2 when D_out allows it, so both v7x TensorCores get
    # work even when the whole batch fits one M tile (harmless on 1-TC chips).
    tn_start = Np if Np <= 128 else min(2048, max(128, _align_down(Np // 2, 128)))

    tn, tk, k_tiled = _choose_nk(Np, Kp, tn_start, in_isz, out_isz_budget,
                                 budget, tm_nominal)

    Np_pad = _round_up(Np, tn)
    Kp_pad = _round_up(Kp, tk)

    # Pad (and optionally down-cast) the static parameters exactly once.
    w_p = jnp.pad(w.astype(in_dtype), ((0, Kp_pad - D_in), (0, Np_pad - D_out)))
    b_p = jnp.pad(b.astype(jnp.float32), (0, Np_pad - D_out)).reshape(1, Np_pad)

    def _apply(x, w_p, b_p):
        B, d_in = x.shape
        assert d_in == D_in
        o_dtype = jnp.dtype(out_dtype) if out_dtype is not None else jnp.dtype(x.dtype)

        Mp = _round_up(B, 8)
        # Largest M tile that fits the budget -> W is re-read as few times as possible.
        tm = 8
        for cand_tm in _halving_candidates(Mp, 8, 8):
            if _tile_bytes(cand_tm, tn, tk, in_isz, o_dtype.itemsize, k_tiled) <= budget:
                tm = cand_tm
                break
        Mp_pad = _round_up(Mp, tm)

        x_p = jnp.pad(x.astype(in_dtype), ((0, Mp_pad - B), (0, Kp_pad - d_in)))

        gm, gn, gk = Mp_pad // tm, Np_pad // tn, Kp_pad // tk

        needed = _tile_bytes(tm, tn, tk, in_isz, o_dtype.itemsize, k_tiled)
        vmem_limit = int(min(max(2 * needed, 16 * 1024 * 1024), int(capacity * 0.9)))

        cost = pl.CostEstimate(
            flops=2 * Mp_pad * Np_pad * Kp_pad,
            transcendentals=0,
            bytes_accessed=(
                Mp_pad * Kp_pad * in_isz
                + Kp_pad * Np_pad * in_isz
                + Np_pad * 4
                + Mp_pad * Np_pad * o_dtype.itemsize
            ),
        )

        if not k_tiled:
            y_p = pl.pallas_call(
                _linear_kernel,
                out_shape=jax.ShapeDtypeStruct((Mp_pad, Np_pad), o_dtype),
                grid_spec=pltpu.PrefetchScalarGridSpec(
                    num_scalar_prefetch=0,
                    grid=(gm, gn),
                    in_specs=[
                        pl.BlockSpec((tm, tk), lambda i, j: (i, 0)),   # x
                        pl.BlockSpec((tk, tn), lambda i, j: (0, j)),   # w
                        pl.BlockSpec((1, tn), lambda i, j: (0, j)),    # bias (f32)
                    ],
                    out_specs=pl.BlockSpec((tm, tn), lambda i, j: (i, j)),
                ),
                compiler_params=pltpu.CompilerParams(
                    dimension_semantics=("parallel", "parallel"),
                    vmem_limit_bytes=vmem_limit,
                ),
                cost_estimate=cost,
            )(x_p, w_p, b_p)
        else:
            y_p = pl.pallas_call(
                _linear_kernel_ktiled,
                out_shape=jax.ShapeDtypeStruct((Mp_pad, Np_pad), o_dtype),
                grid_spec=pltpu.PrefetchScalarGridSpec(
                    num_scalar_prefetch=0,
                    grid=(gm, gn, gk),
                    in_specs=[
                        pl.BlockSpec((tm, tk), lambda i, j, k: (i, k)),   # x
                        pl.BlockSpec((tk, tn), lambda i, j, k: (k, j)),   # w
                        pl.BlockSpec((1, tn), lambda i, j, k: (0, j)),    # bias (f32)
                    ],
                    out_specs=pl.BlockSpec((tm, tn), lambda i, j, k: (i, j)),
                    scratch_shapes=[pltpu.VMEM((tm, tn), jnp.float32)],
                ),
                compiler_params=pltpu.CompilerParams(
                    dimension_semantics=("parallel", "parallel", "arbitrary"),
                    vmem_limit_bytes=vmem_limit,
                ),
                cost_estimate=cost,
            )(x_p, w_p, b_p)

        return y_p[:B, :D_out]

    jitted = jax.jit(_apply)

    def apply(x):
        return jitted(x, w_p, b_p)

    return apply


def linear_classifier(x, w, b, **kwargs):
    """One-shot convenience wrapper: y = x @ w + b."""
    return make_linear_classifier(w, b, **kwargs)(x)


if __name__ == "__main__":
    # Small deterministic setup consistent with LinearClassifier(input_size=32, output_size=10)
    batch = 8
    input_size = 32
    output_size = 10

    key = jax.random.PRNGKey(0)
    kx, kw, kb = jax.random.split(key, 3)

    # Mimic PyTorch nn.Linear init: U(-1/sqrt(in), 1/sqrt(in)); weight stored as weight.T
    bound = 1.0 / (input_size ** 0.5)
    w = jax.random.uniform(kw, (input_size, output_size), jnp.float32, -bound, bound)
    b = jax.random.uniform(kb, (output_size,), jnp.float32, -bound, bound)
    x = jax.random.normal(kx, (batch, input_size), jnp.float32)

    y_ref = x @ w + b

    # f32 compute path (exact vs reference)
    apply_f32 = make_linear_classifier(w, b)
    y = jax.block_until_ready(apply_f32(x))
    assert y.shape == (batch, output_size)
    assert jnp.allclose(y, y_ref, atol=1e-5, rtol=1e-5)

    # bf16 compute path (MXU-native rate, half the operand HBM traffic); f32 epilogue.
    apply_bf16 = make_linear_classifier(w, b, compute_dtype=jnp.bfloat16)
    y_bf = jax.block_until_ready(apply_bf16(x))
    assert y_bf.shape == (batch, output_size)
    assert jnp.allclose(y_bf, y_ref, atol=3e-2, rtol=3e-2)

    print("KERNEL_OK")
</pallas_src>

<mosaic_0001>
module attributes {stable_mosaic.version = 11 : i64} {
  func.func @_linear_kernel(%arg0: i32, %arg1: i32, %arg2: memref<8x128xf32, #tpu.memory_space<vmem>>, %arg3: memref<128x128xf32, #tpu.memory_space<vmem>>, %arg4: memref<1x128xf32, #tpu.memory_space<vmem>>, %arg5: memref<8x128xf32, #tpu.memory_space<vmem>>) attributes {dimension_semantics = [#tpu.dimension_semantics<parallel>, #tpu.dimension_semantics<parallel>], iteration_bounds = array<i64: 1, 1>, scalar_prefetch = 0 : i64, scratch_operands = 0 : i64, tpu.core_type = #tpu.core_type<tc>, window_params = [{transform_indices = @transform_0, window_bounds = array<i64: 8, 128>}, {transform_indices = @transform_1, window_bounds = array<i64: 128, 128>}, {transform_indices = @transform_2, window_bounds = array<i64: 1, 128>}, {transform_indices = @transform_3, window_bounds = array<i64: 8, 128>}]} {
    %c0 = arith.constant 0 : index
    %c0_0 = arith.constant 0 : index
    %0 = vector.load %arg2[%c0, %c0_0] : memref<8x128xf32, #tpu.memory_space<vmem>>, vector<8x128xf32>
    %c0_1 = arith.constant 0 : index
    %c0_2 = arith.constant 0 : index
    %1 = vector.load %arg3[%c0_1, %c0_2] : memref<128x128xf32, #tpu.memory_space<vmem>>, vector<128x128xf32>
    %cst = arith.constant dense<0.000000e+00> : vector<8x128xf32>
    %2 = tpu.matmul %0, %1, %cst {dimension_numbers = #tpu.dot_dimension_numbers<[1], [0], [0], [1], [0, 0, 1, 1], [], []>} : vector<8x128xf32>, vector<128x128xf32>, vector<8x128xf32> -> vector<8x128xf32>
    %c0_3 = arith.constant 0 : index
    %c0_4 = arith.constant 0 : index
    %3 = vector.load %arg4[%c0_3, %c0_4] : memref<1x128xf32, #tpu.memory_space<vmem>>, vector<1x128xf32>
    %4 = vector.broadcast %3 : vector<1x128xf32> to vector<8x128xf32>
    %5 = arith.addf %2, %4 : vector<8x128xf32>
    %c0_5 = arith.constant 0 : index
    %c0_6 = arith.constant 0 : index
    %6 = vector.load %arg5[%c0_5, %c0_6] : memref<8x128xf32, #tpu.memory_space<vmem>>, vector<8x128xf32>
    tpu.vector_store %arg5[%c0_5, %c0_6], %5 {strides = array<i32>} : memref<8x128xf32, #tpu.memory_space<vmem>>, vector<8x128xf32>,
    return
  }
  func.func @transform_0(%arg0: i32, %arg1: i32) -> (i32, i32) {
    %c0_i32 = arith.constant 0 : i32
    %c0_i32_0 = arith.constant 0 : i32
    return %arg0, %c0_i32 : i32, i32
  }
  func.func @transform_1(%arg0: i32, %arg1: i32) -> (i32, i32) {
    %c0_i32 = arith.constant 0 : i32
    %c0_i32_0 = arith.constant 0 : i32
    return %c0_i32, %arg1 : i32, i32
  }
  func.func @transform_2(%arg0: i32, %arg1: i32) -> (i32, i32) {
    %c0_i32 = arith.constant 0 : i32
    %c0_i32_0 = arith.constant 0 : i32
    return %c0_i32, %arg1 : i32, i32
  }
  func.func @transform_3(%arg0: i32, %arg1: i32) -> (i32, i32) {
    %c0_i32 = arith.constant 0 : i32
    return %arg0, %arg1 : i32, i32
  }
}

</mosaic_0001>

<llo_original>
// kernel: _apply.1
$region0: #{_apply.1}
  #allocation0 [shape = 'u32[]', space=smem, size = 0x4, offset = 0x4, fixed_abs, tag = 'smem constant byte address 0x4 - core index']
  #allocation1 [shape = 'u32[144,128]{1,0:T(1,128)}', space=vmem, size = 0x12000, scoped, tag = 'internal scratch']
  %s0 = inlined_call_operand.vmem [shape: f32[8,128], index: 0, kind: input, shape index: {}]
  %s1 = inlined_call_operand.hbm [shape: f32[128,128], index: 1, kind: input, shape index: {}]
  %s2 = inlined_call_operand.vmem [shape: f32[1,128], index: 2, kind: input, shape index: {}]
  %s3 = inlined_call_operand.hbm [shape: f32[8,128], index: 3, kind: output, shape index: {}]
  %s4 = sld [smem:[#allocation0]]
  $region26: #{_apply.1} parent=0
    _
  %s6 = ssub.s32 1, %s4
  %s7 = scalar_select 0, %s6, %s4
  $region1: #{_apply.1} parent=0
    #allocation2 [shape = 'u8[65536]{0}', space=vmem, size = 0x10000, scoped, tag = 'input window, operand 1, single buffered']
    #allocation3 [shape = 's32[1]{0}', space=sflag, size = 0x4, scoped, tag = 'scoped memory for _apply.1']
    #allocation4 [shape = 's32[1]{0}', space=sflag, size = 0x4, scoped, tag = 'scoped memory for _apply.1']
    #allocation5 [shape = 'u8[4096]{0}', space=vmem, size = 0x1000, scoped, tag = 'output window, operand 0, single buffered']
    %8 = vsyncpa [#allocation3], 0
    %9 = vsyncpa [#allocation4], 0
    // Predicated region
    $region2: #{_apply.1} parent=1 // pred_check
      _
    $region3: #{_apply.1} parent=1 // pred_check_branch
      %11 = sbr.rel (0) target = $region5
    $region4: #{_apply.1} parent=1 // pred_region
      _
    $region5: #{_apply.1} parent=1 // pred_fallthru
      _
    // Predicated region
    $region6: #{_apply.1} parent=1 // pred_check
      _
    $region7: #{_apply.1} parent=1 // pred_check_branch
      %13 = sbr.rel (0) target = $region9
    $region8: #{_apply.1} parent=1 // pred_region
      %s15 = ssub.s32 2048, 2048
      %16 = vsyncadd [#allocation3], %s15
      %s17 = sshll.u32 [#allocation2], 4
      %s18 = int_to_ptr.vmem [resolvable:$true] %s17
      %23 = dma.hbm_to_vmem [thread:$0]  %s1, 2048, %s18, [#allocation3], 128, 128, 8
    $region9: #{_apply.1} parent=1 // pred_fallthru
      _
    // Predicated region
    $region10: #{_apply.1} parent=1 // pred_check
      _
    $region11: #{_apply.1} parent=1 // pred_check_branch
      %25 = sbr.rel (0) target = $region13
    $region12: #{_apply.1} parent=1 // pred_region
      _
    $region13: #{_apply.1} parent=1 // pred_fallthru
      _
    // Predicated region
    $region14: #{_apply.1} parent=1 // pred_check
      _
    $region15: #{_apply.1} parent=1 // pred_check_branch
      %27 = sbr.rel (0) target = $region17
    $region16: #{_apply.1} parent=1 // pred_region
      %28 = dma.done [#allocation3], 2048
    $region17: #{_apply.1} parent=1 // pred_fallthru
      _
    %v29 = vld [vmem:[%s0] sm:$0xff]
    %v30 = vld [vmem:[#allocation2] sm:$0xff]
    %v31 = vld [vmem:[#allocation2 + $0x8] sm:$0xff]
    %v32 = vld [vmem:[#allocation2 + $0x10] sm:$0xff]
    %v33 = vld [vmem:[#allocation2 + $0x18] sm:$0xff]
    %v34 = vld [vmem:[#allocation2 + $0x20] sm:$0xff]
    %v35 = vld [vmem:[#allocation2 + $0x28] sm:$0xff]
    %v36 = vld [vmem:[#allocation2 + $0x30] sm:$0xff]
    %v37 = vld [vmem:[#allocation2 + $0x38] sm:$0xff]
    %v38 = vld [vmem:[#allocation2 + $0x40] sm:$0xff]
    %v39 = vld [vmem:[#allocation2 + $0x48] sm:$0xff]
    %v40 = vld [vmem:[#allocation2 + $0x50] sm:$0xff]
    %v41 = vld [vmem:[#allocation2 + $0x58] sm:$0xff]
    %v42 = vld [vmem:[#allocation2 + $0x60] sm:$0xff]
    %v43 = vld [vmem:[#allocation2 + $0x68] sm:$0xff]
    %v44 = vld [vmem:[#allocation2 + $0x70] sm:$0xff]
    %v45 = vld [vmem:[#allocation2 + $0x78] sm:$0xff]
    %v46 = vld [vmem:[%s2] sm:$0x1]
    %v48 = vlaneseq
    %v49 = vshrl.u32 %v48, 7
    %v50 = vsub.s32 0, %v49
    %v51 = vrot.slane %v46, %v50
    %53 = vmatprep.subr.mxu0 0.0
    %54 = vmatpush1.msra.mxu0 %v30
    %55 = vmatprep.subr.mxu0 0.0
    %56 = vmatpush1.msra.mxu0 %v31
    %57 = vmatprep.subr.mxu0 0.0
    %58 = vmatpush1.msra.mxu0 %v32
    %59 = vmatprep.subr.mxu0 0.0
    %60 = vmatpush1.msra.mxu0 %v33
    %61 = vmatprep.subr.mxu0 0.0
    %62 = vmatpush1.msra.mxu0 %v34
    %63 = vmatprep.subr.mxu0 0.0
    %64 = vmatpush1.msra.mxu0 %v35
    %65 = vmatprep.subr.mxu0 0.0
    %66 = vmatpush1.msra.mxu0 %v36
    %67 = vmatprep.subr.mxu0 0.0
    %68 = vmatpush1.msra.mxu0 %v37
    %69 = vmatprep.subr.mxu0 0.0
    %70 = vmatpush1.msra.mxu0 %v38
    %71 = vmatprep.subr.mxu0 0.0
    %72 = vmatpush1.msra.mxu0 %v39
    %73 = vmatprep.subr.mxu0 0.0
    %74 = vmatpush1.msra.mxu0 %v40
    %75 = vmatprep.subr.mxu0 0.0
    %76 = vmatpush1.msra.mxu0 %v41
    %77 = vmatprep.subr.mxu0 0.0
    %78 = vmatpush1.msra.mxu0 %v42
    %79 = vmatprep.subr.mxu0 0.0
    %80 = vmatpush1.msra.mxu0 %v43
    %81 = vmatprep.subr.mxu0 0.0
    %82 = vmatpush1.msra.mxu0 %v44
    %83 = vmatprep.subr.mxu0 0.0
    %84 = vmatpush1.msra.mxu0 %v45
    %85 = vmatprep.subr.mxu0 0.0
    %86 = vmatpush1.msra.mxu0 0.0
    %87 = vmatprep.subr.mxu0 0.0
    %88 = vmatpush1.msra.mxu0 0.0
    %89 = vmatprep.subr.mxu0 0.0
    %90 = vmatpush1.msra.mxu0 0.0
    %91 = vmatprep.subr.mxu0 0.0
    %92 = vmatpush1.msra.mxu0 0.0
    %93 = vmatprep.subr.mxu0 0.0
    %94 = vmatpush1.msra.mxu0 0.0
    %95 = vmatprep.subr.mxu0 0.0
    %96 = vmatpush1.msra.mxu0 0.0
    %97 = vmatprep.subr.mxu0 0.0
    %98 = vmatpush1.msra.mxu0 0.0
    %99 = vmatprep.subr.mxu0 0.0
    %100 = vmatpush1.msra.mxu0 0.0
    %101 = vmatprep.subr.mxu0 0.0
    %102 = vmatpush1.msra.mxu0 0.0
    %103 = vmatprep.subr.mxu0 0.0
    %104 = vmatpush1.msra.mxu0 0.0
    %105 = vmatprep.subr.mxu0 0.0
    %106 = vmatpush1.msra.mxu0 0.0
    %107 = vmatprep.subr.mxu0 0.0
    %108 = vmatpush1.msra.mxu0 0.0
    %109 = vmatprep.subr.mxu0 0.0
    %110 = vmatpush1.msra.mxu0 0.0
    %111 = vmatprep.subr.mxu0 0.0
    %112 = vmatpush1.msra.mxu0 0.0
    %113 = vmatprep.subr.mxu0 0.0
    %114 = vmatpush1.msra.mxu0 0.0
    %115 = vmatprep.subr.mxu0 0.0
    %116 = vmatpush1.msra.mxu0 0.0
    %117 = vmatprep.mubr.f32.mxu0 0.0
    %118 = vmatmul.mubr.f32.gmra.mrb[0].mxu0 %v29
    %v119 = vpop.f32.mrb[0].mxu0
    %v120 = vadd.f32 %v51, %v119
    %v121 = vpop.f32.mrb[0].mxu0
    %122 = vdwg.mxu0
    %123 = vst [vmem:[#allocation5] sm:$0xff] %v120
    // Predicated region
    $region18: #{_apply.1} parent=1 // pred_check
      _
    $region19: #{_apply.1} parent=1 // pred_check_branch
      %125 = sbr.rel (0) target = $region21
    $region20: #{_apply.1} parent=1 // pred_region
      %s127 = ssub.s32 128, 128
      %128 = vsyncadd [#allocation4], %s127
      %s130 = sshll.u32 [#allocation5], 4
      %s131 = int_to_ptr.vmem [resolvable:$true] %s130
      %133 = dma.vmem_to_hbm [thread:$0]  %s131, 128, %s3, [#allocation4]
    $region21: #{_apply.1} parent=1 // pred_fallthru
      _
    // Predicated region
    $region22: #{_apply.1} parent=1 // pred_check
      _
    $region23: #{_apply.1} parent=1 // pred_check_branch
      %135 = sbr.rel (0) target = $region25
    $region24: #{_apply.1} parent=1 // pred_region
      %136 = dma.done [#allocation4], 128
    $region25: #{_apply.1} parent=1 // pred_fallthru
      _
    %137 = vsyncpa [#allocation3], 1
    %138 = vsyncpa [#allocation4], 1

</llo_original>
